<compile_context>
chip_gen: v7x
topology: tpu7x:2x2x1
jax: 0.10.0
libtpu: 0.0.40
codegen_flags: <defaults>
</compile_context>

<pallas_src>
import functools

import jax
import jax.numpy as jnp
from jax.experimental import pallas as pl
from jax.experimental.pallas import tpu as pltpu


# ---------------------------------------------------------------------------
# Kernels
# ---------------------------------------------------------------------------
def _ca_fused_kernel(x_ref, w1e_ref, b1row_ref, w2e_ref, b2col_ref, o_ref, *,
                     bt, C, inv_hw):
    """Single-pass kernel: block holds bt complete samples as rows (r = b*C+c)."""
    rt = bt * C
    x = x_ref[...]                                         # (rt, HWp) input dtype

    # Per-row spatial mean on the MXU (f32 accumulate; no f32 copy of x).
    ones_col = jnp.ones((x.shape[-1], 1), x.dtype)
    mean_col = jnp.dot(x, ones_col,
                       preferred_element_type=jnp.float32) * inv_hw   # (rt, 1)

    # 0/1 select matrices mapping rows <-> samples, built from iota compares
    # (tiny; avoids shipping + double-buffering them through HBM/VMEM).
    r_ids = jax.lax.broadcasted_iota(jnp.int32, (bt, rt), 1)
    b_ids = jax.lax.broadcasted_iota(jnp.int32, (bt, rt), 0)
    u = jnp.where((r_ids >= b_ids * C) & (r_ids < (b_ids + 1) * C),
                  1.0, 0.0).astype(jnp.float32)            # (bt, rt)
    r_ids_t = jax.lax.broadcasted_iota(jnp.int32, (rt, bt), 0)
    b_ids_t = jax.lax.broadcasted_iota(jnp.int32, (rt, bt), 1)
    ut = jnp.where((r_ids_t >= b_ids_t * C) & (r_ids_t < (b_ids_t + 1) * C),
                   1.0, 0.0).astype(jnp.float32)           # (rt, bt)

    # Squeeze 1x1 conv + ReLU, batched over the bt samples of this block.
    #   w1e[r, m] = w1[m, r % C]
    mv = mean_col * w1e_ref[...]                            # (rt, mid) f32
    h = jnp.dot(u, mv, preferred_element_type=jnp.float32) + b1row_ref[...]
    h = jnp.maximum(h, 0.0)                                 # (bt, mid)

    # Excite 1x1 conv scattered back to row layout, then sigmoid.
    #   w2e[r, m] = w2[r % C, m],  b2col[r] = b2[r % C]
    h_rows = jnp.dot(ut, h, preferred_element_type=jnp.float32)        # (rt, mid)
    z = jnp.sum(h_rows * w2e_ref[...], axis=-1, keepdims=True) + b2col_ref[...]
    y = jax.nn.sigmoid(z)                                   # (rt, 1) f32

    # Scale in the input dtype: only the tiny y column is cast, never x.
    o_ref[...] = x * y.astype(x.dtype)


def _ca_rowmean_kernel(x_ref, s_ref, *, inv_hw):
    """Phase A of the HW-tiled path: per-row mean, accumulated over HW tiles."""
    j = pl.program_id(1)

    @pl.when(j == 0)
    def _init():
        s_ref[...] = jnp.zeros_like(s_ref)

    x = x_ref[...]                                          # (rc, hw_t)
    ones_col = jnp.ones((x.shape[-1], 1), x.dtype)
    s_ref[...] += jnp.dot(x, ones_col, preferred_element_type=jnp.float32)

    @pl.when(j == pl.num_programs(1) - 1)
    def _fin():
        s_ref[...] = s_ref[...] * inv_hw


def _ca_scale_kernel(x_ref, y_ref, o_ref):
    """Phase B of the HW-tiled path: out = x * y (per-row broadcast)."""
    o_ref[...] = x_ref[...] * y_ref[...]


# ---------------------------------------------------------------------------
# Block / budget selection
# ---------------------------------------------------------------------------
def _vmem_budget_bytes():
    """Per-generation VMEM budget with headroom (v7x: 64 MiB/TC; v5e/v6e: 128)."""
    try:
        cap = int(pltpu.get_tpu_info().vmem_capacity_bytes)
    except Exception:
        cap = 64 << 20            # conservative: v7x per-TensorCore VMEM
    return min((cap * 3) // 4, 96 << 20)


def _pick_bt(B, C, HWp, itemsize, sub, target_block_bytes):
    """Samples-per-block for the fused path, or None if no whole-sample row
    block fits the target. Prefers leaving grid >= 2 (v7x has 2 TensorCores)."""
    fitting = []
    for bt in range(1, B + 1):
        if B % bt:
            continue
        rt = bt * C
        if rt % sub != 0 and bt != B:
            continue
        if bt * rt > (1 << 17):   # bound in-kernel select-matrix build cost
            continue
        if rt * HWp * itemsize <= target_block_bytes:
            fitting.append(bt)
    if not fitting:
        return None
    multi = [bt for bt in fitting if B // bt >= 2]
    return max(multi) if multi else max(fitting)


def _pick_two_phase_blocks(R, HWp, itemsize, sub, target_block_bytes):
    """Row-block / HW-tile sizes for the two-phase path."""
    row_divs = [d for d in range(1, R + 1)
                if R % d == 0 and (d % sub == 0 or d == R)]
    rc_cands = [d for d in row_divs if d <= 1024]
    rc = max(rc_cands) if rc_cands else min(row_divs)
    hw_divs = [d for d in range(128, HWp + 1, 128) if HWp % d == 0] or [HWp]
    max_hw = max(128, target_block_bytes // max(1, rc * itemsize))
    hw_fit = [d for d in hw_divs if d <= max_hw]
    hw_t = max(hw_fit) if hw_fit else min(hw_divs)
    return rc, hw_t


# ---------------------------------------------------------------------------
# Wrapper
# ---------------------------------------------------------------------------
def channel_attention_pallas(x, w1, b1, w2, b2, *, max_block_bytes=None,
                             donate_x=False):
    """x: (B, C, H, W). w1: (mid, C), b1: (mid,), w2: (C, mid), b2: (C,)."""
    B, C, H, W = x.shape
    mid = w1.shape[0]
    HW = H * W
    R = B * C
    itemsize = jnp.dtype(x.dtype).itemsize
    sub = 8 * max(1, 4 // itemsize)          # sublane multiple per dtype packing

    vmem_budget = _vmem_budget_bytes()
    target = (max_block_bytes if max_block_bytes is not None
              else min(8 << 20, vmem_budget // 6))

    # Lane-dense layout: (B, C) rows on sublanes, spatial on lanes; pad HW to a
    # multiple of 128 only when needed (zeros; mean uses the true HW).
    HWp = HW if HW % 128 == 0 else ((HW + 127) // 128) * 128
    x2 = x.reshape(R, HW)
    if HWp != HW:
        x2 = jnp.pad(x2, ((0, 0), (0, HWp - HW)))
    inv_hw = 1.0 / HW

    alias = {0: 0} if donate_x else {}
    bt = _pick_bt(B, C, HWp, itemsize, sub, target)

    if bt is not None:
        # -------- single-pass fused path: whole samples per block --------
        rt = bt * C
        w1e = jnp.tile(w1.T.astype(jnp.float32), (bt, 1))            # (rt, mid)
        w2e = jnp.tile(w2.astype(jnp.float32), (bt, 1))              # (rt, mid)
        b1row = b1.astype(jnp.float32).reshape(1, mid)               # (1, mid)
        b2col = jnp.tile(b2.astype(jnp.float32), bt).reshape(rt, 1)  # (rt, 1)

        param_bytes = 4 * (2 * rt * mid + mid + rt)
        cost = pl.CostEstimate(
            flops=3 * R * HWp + 4 * R * mid,
            transcendentals=R,
            bytes_accessed=2 * R * HWp * itemsize + param_bytes)

        out2 = pl.pallas_call(
            functools.partial(_ca_fused_kernel, bt=bt, C=C, inv_hw=inv_hw),
            out_shape=jax.ShapeDtypeStruct((R, HWp), x.dtype),
            grid_spec=pltpu.PrefetchScalarGridSpec(
                num_scalar_prefetch=0,
                grid=(B // bt,),
                in_specs=[
                    pl.BlockSpec((rt, HWp), lambda i: (i, 0)),   # x rows
                    pl.BlockSpec((rt, mid), lambda i: (0, 0)),   # w1 expanded
                    pl.BlockSpec((1, mid), lambda i: (0, 0)),    # b1
                    pl.BlockSpec((rt, mid), lambda i: (0, 0)),   # w2 expanded
                    pl.BlockSpec((rt, 1), lambda i: (0, 0)),     # b2
                ],
                out_specs=pl.BlockSpec((rt, HWp), lambda i: (i, 0)),
            ),
            compiler_params=pltpu.CompilerParams(
                dimension_semantics=("parallel",),
                vmem_limit_bytes=vmem_budget),
            cost_estimate=cost,
            input_output_aliases=alias,
        )(x2, w1e, b1row, w2e, b2col)
    else:
        # -------- two-phase HW-tiled path (large C*HW feature maps) --------
        rc, hw_t = _pick_two_phase_blocks(R, HWp, itemsize, sub, target)
        grid = (R // rc, HWp // hw_t)

        # Phase A: per-row mean, accumulated over HW tiles (reduction axis last).
        means = pl.pallas_call(
            functools.partial(_ca_rowmean_kernel, inv_hw=inv_hw),
            out_shape=jax.ShapeDtypeStruct((R, 1), jnp.float32),
            grid_spec=pltpu.PrefetchScalarGridSpec(
                num_scalar_prefetch=0,
                grid=grid,
                in_specs=[pl.BlockSpec((rc, hw_t), lambda i, j: (i, j))],
                out_specs=pl.BlockSpec((rc, 1), lambda i, j: (i, 0)),
            ),
            compiler_params=pltpu.CompilerParams(
                dimension_semantics=("parallel", "arbitrary"),
                vmem_limit_bytes=vmem_budget),
            cost_estimate=pl.CostEstimate(
                flops=2 * R * HWp, transcendentals=0,
                bytes_accessed=R * HWp * itemsize + 4 * R),
        )(x2)

        # Tiny squeeze-excite MLP on (B, C) means — negligible, plain JAX (f32).
        m = means.reshape(B, C)
        h = jnp.maximum(m @ w1.astype(jnp.float32).T + b1.astype(jnp.float32), 0.0)
        z = h @ w2.astype(jnp.float32).T + b2.astype(jnp.float32)
        y_col = jax.nn.sigmoid(z).reshape(R, 1).astype(x.dtype)

        # Phase B: stream x again and scale by the per-row attention.
        out2 = pl.pallas_call(
            _ca_scale_kernel,
            out_shape=jax.ShapeDtypeStruct((R, HWp), x.dtype),
            grid_spec=pltpu.PrefetchScalarGridSpec(
                num_scalar_prefetch=0,
                grid=grid,
                in_specs=[
                    pl.BlockSpec((rc, hw_t), lambda i, j: (i, j)),
                    pl.BlockSpec((rc, 1), lambda i, j: (i, 0)),
                ],
                out_specs=pl.BlockSpec((rc, hw_t), lambda i, j: (i, j)),
            ),
            compiler_params=pltpu.CompilerParams(
                dimension_semantics=("parallel", "parallel"),
                vmem_limit_bytes=vmem_budget),
            cost_estimate=pl.CostEstimate(
                flops=R * HWp, transcendentals=0,
                bytes_accessed=2 * R * HWp * itemsize + R * itemsize),
            input_output_aliases=alias,
        )(x2, y_col)

    if HWp != HW:
        out2 = out2[:, :HW]
    return out2.reshape(B, C, H, W)


# ---------------------------------------------------------------------------
# Pure-JAX reference
# ---------------------------------------------------------------------------
def channel_attention_ref(x, w1, b1, w2, b2):
    mean = jnp.mean(x, axis=(2, 3))                         # (B, C)
    h = jnp.maximum(mean @ w1.T + b1, 0.0)                  # (B, mid)
    y = jax.nn.sigmoid(h @ w2.T + b2)                       # (B, C)
    return x * y[:, :, None, None]


if __name__ == "__main__":
    # Small shapes consistent with the module: num_feat=4, squeeze_factor=2.
    B, C, H, W = 2, 4, 16, 16
    squeeze_factor = 2
    mid = C // squeeze_factor

    key = jax.random.PRNGKey(0)
    kx, k1, k2, k3, k4 = jax.random.split(key, 5)

    x = jax.random.normal(kx, (B, C, H, W), dtype=jnp.float32)
    # Parameters match nn.Conv2d(C, mid, 1) / nn.Conv2d(mid, C, 1), squeezed.
    w1 = 0.1 * jax.random.normal(k1, (mid, C), dtype=jnp.float32)
    b1 = 0.1 * jax.random.normal(k2, (mid,), dtype=jnp.float32)
    w2 = 0.1 * jax.random.normal(k3, (C, mid), dtype=jnp.float32)
    b2 = 0.1 * jax.random.normal(k4, (C,), dtype=jnp.float32)

    ref = channel_attention_ref(x, w1, b1, w2, b2)

    # Fast fused single-pass path.
    out = jax.block_until_ready(channel_attention_pallas(x, w1, b1, w2, b2))
    assert out.shape == (B, C, H, W)
    assert jnp.allclose(out, ref, atol=1e-5, rtol=1e-5), "fused path mismatch"

    # Force the HW-tiled two-phase fallback on the same data (tiny block cap).
    out2 = jax.block_until_ready(
        channel_attention_pallas(x, w1, b1, w2, b2, max_block_bytes=4096))
    assert jnp.allclose(out2, ref, atol=1e-5, rtol=1e-5), "two-phase mismatch"

    # Exercise lane padding (HW not a multiple of 128).
    xp = jax.random.normal(kx, (B, C, 6, 6), dtype=jnp.float32)
    refp = channel_attention_ref(xp, w1, b1, w2, b2)
    outp = jax.block_until_ready(channel_attention_pallas(xp, w1, b1, w2, b2))
    assert jnp.allclose(outp, refp, atol=1e-5, rtol=1e-5), "padded path mismatch"

    print("KERNEL_OK")
</pallas_src>

<mosaic_0001>
module attributes {stable_mosaic.version = 11 : i64} {
  func.func @_ca_fused_kernel(%arg0: i32, %arg1: memref<8x256xf32, #tpu.memory_space<vmem>>, %arg2: memref<8x2xf32, #tpu.memory_space<vmem>>, %arg3: memref<1x2xf32, #tpu.memory_space<vmem>>, %arg4: memref<8x2xf32, #tpu.memory_space<vmem>>, %arg5: memref<8x1xf32, #tpu.memory_space<vmem>>, %arg6: memref<8x256xf32, #tpu.memory_space<vmem>>) attributes {dimension_semantics = [#tpu.dimension_semantics<parallel>], iteration_bounds = array<i64: 1>, scalar_prefetch = 0 : i64, scratch_operands = 0 : i64, tpu.core_type = #tpu.core_type<tc>, window_params = [{transform_indices = @transform_0, window_bounds = array<i64: 8, 256>}, {pipeline_mode = #tpu.pipeline_mode<synchronous>, transform_indices = @transform_1, window_bounds = array<i64: 8, 2>}, {pipeline_mode = #tpu.pipeline_mode<synchronous>, transform_indices = @transform_2, window_bounds = array<i64: 1, 2>}, {pipeline_mode = #tpu.pipeline_mode<synchronous>, transform_indices = @transform_3, window_bounds = array<i64: 8, 2>}, {pipeline_mode = #tpu.pipeline_mode<synchronous>, transform_indices = @transform_4, window_bounds = array<i64: 8, 1>}, {transform_indices = @transform_5, window_bounds = array<i64: 8, 256>}]} {
    %c0 = arith.constant 0 : index
    %c0_0 = arith.constant 0 : index
    %0 = vector.load %arg1[%c0, %c0_0] : memref<8x256xf32, #tpu.memory_space<vmem>>, vector<8x256xf32>
    %cst = arith.constant 1.000000e+00 : f32
    %1 = vector.broadcast %cst : f32 to vector<256x1xf32>
    %cst_1 = arith.constant dense<0.000000e+00> : vector<8x1xf32>
    %2 = tpu.matmul %0, %1, %cst_1 {dimension_numbers = #tpu.dot_dimension_numbers<[1], [0], [0], [1], [0, 0, 1, 1], [], []>} : vector<8x256xf32>, vector<256x1xf32>, vector<8x1xf32> -> vector<8x1xf32>
    %cst_2 = arith.constant 3.906250e-03 : f32
    %3 = vector.broadcast %cst_2 : f32 to vector<8x1xf32>
    %4 = arith.mulf %2, %3 : vector<8x1xf32>
    %5 = tpu.iota {dimensions = array<i32: 1>} : vector<2x8xi32>
    %6 = tpu.iota {dimensions = array<i32: 0>} : vector<2x8xi32>
    %c4_i32 = arith.constant 4 : i32
    %7 = vector.broadcast %c4_i32 : i32 to vector<2x8xi32>
    %8 = arith.muli %6, %7 : vector<2x8xi32>
    %9 = arith.cmpi sge, %5, %8 : vector<2x8xi32>
    %c1_i32 = arith.constant 1 : i32
    %10 = vector.broadcast %c1_i32 : i32 to vector<2x8xi32>
    %11 = arith.addi %6, %10 : vector<2x8xi32>
    %c4_i32_3 = arith.constant 4 : i32
    %12 = vector.broadcast %c4_i32_3 : i32 to vector<2x8xi32>
    %13 = arith.muli %11, %12 : vector<2x8xi32>
    %14 = arith.cmpi slt, %5, %13 : vector<2x8xi32>
    %15 = arith.andi %9, %14 : vector<2x8xi1>
    %cst_4 = arith.constant 1.000000e+00 : f32
    %cst_5 = arith.constant 0.000000e+00 : f32
    %16 = vector.broadcast %cst_4 : f32 to vector<2x8xf32>
    %17 = vector.broadcast %cst_5 : f32 to vector<2x8xf32>
    %18 = arith.select %15, %16, %17 : vector<2x8xi1>, vector<2x8xf32>
    %19 = tpu.iota {dimensions = array<i32: 0>} : vector<8x2xi32>
    %20 = tpu.iota {dimensions = array<i32: 1>} : vector<8x2xi32>
    %c4_i32_6 = arith.constant 4 : i32
    %21 = vector.broadcast %c4_i32_6 : i32 to vector<8x2xi32>
    %22 = arith.muli %20, %21 : vector<8x2xi32>
    %23 = arith.cmpi sge, %19, %22 : vector<8x2xi32>
    %c1_i32_7 = arith.constant 1 : i32
    %24 = vector.broadcast %c1_i32_7 : i32 to vector<8x2xi32>
    %25 = arith.addi %20, %24 : vector<8x2xi32>
    %c4_i32_8 = arith.constant 4 : i32
    %26 = vector.broadcast %c4_i32_8 : i32 to vector<8x2xi32>
    %27 = arith.muli %25, %26 : vector<8x2xi32>
    %28 = arith.cmpi slt, %19, %27 : vector<8x2xi32>
    %29 = arith.andi %23, %28 : vector<8x2xi1>
    %cst_9 = arith.constant 1.000000e+00 : f32
    %cst_10 = arith.constant 0.000000e+00 : f32
    %30 = vector.broadcast %cst_9 : f32 to vector<8x2xf32>
    %31 = vector.broadcast %cst_10 : f32 to vector<8x2xf32>
    %32 = arith.select %29, %30, %31 : vector<8x2xi1>, vector<8x2xf32>
    %c0_11 = arith.constant 0 : index
    %c0_12 = arith.constant 0 : index
    %33 = vector.load %arg2[%c0_11, %c0_12] : memref<8x2xf32, #tpu.memory_space<vmem>>, vector<8x2xf32>
    %34 = vector.broadcast %4 : vector<8x1xf32> to vector<8x2xf32>
    %35 = arith.mulf %34, %33 : vector<8x2xf32>
    %cst_13 = arith.constant dense<0.000000e+00> : vector<2x2xf32>
    %36 = tpu.matmul %18, %35, %cst_13 {dimension_numbers = #tpu.dot_dimension_numbers<[1], [0], [0], [1], [0, 0, 1, 1], [], []>} : vector<2x8xf32>, vector<8x2xf32>, vector<2x2xf32> -> vector<2x2xf32>
    %c0_14 = arith.constant 0 : index
    %c0_15 = arith.constant 0 : index
    %37 = vector.load %arg3[%c0_14, %c0_15] : memref<1x2xf32, #tpu.memory_space<vmem>>, vector<1x2xf32>
    %38 = vector.broadcast %37 : vector<1x2xf32> to vector<2x2xf32>
    %39 = arith.addf %36, %38 : vector<2x2xf32>
    %cst_16 = arith.constant 0.000000e+00 : f32
    %40 = vector.broadcast %cst_16 : f32 to vector<2x2xf32>
    %41 = arith.maximumf %39, %40 : vector<2x2xf32>
    %cst_17 = arith.constant dense<0.000000e+00> : vector<8x2xf32>
    %42 = tpu.matmul %32, %41, %cst_17 {dimension_numbers = #tpu.dot_dimension_numbers<[1], [0], [0], [1], [0, 0, 1, 1], [], []>} : vector<8x2xf32>, vector<2x2xf32>, vector<8x2xf32> -> vector<8x2xf32>
    %c0_18 = arith.constant 0 : index
    %c0_19 = arith.constant 0 : index
    %43 = vector.load %arg4[%c0_18, %c0_19] : memref<8x2xf32, #tpu.memory_space<vmem>>, vector<8x2xf32>
    %44 = arith.mulf %42, %43 : vector<8x2xf32>
    %cst_20 = arith.constant dense<0.000000e+00> : vector<8xf32>
    %45 = vector.multi_reduction <add>, %44, %cst_20 [1] : vector<8x2xf32> to vector<8xf32>
    %46 = vector.shape_cast %45 : vector<8xf32> to vector<8x1xf32>
    %c0_21 = arith.constant 0 : index
    %c0_22 = arith.constant 0 : index
    %47 = vector.load %arg5[%c0_21, %c0_22] : memref<8x1xf32, #tpu.memory_space<vmem>>, vector<8x1xf32>
    %48 = arith.addf %46, %47 : vector<8x1xf32>
    %49 = arith.negf %48 : vector<8x1xf32>
    %50 = math.exp %49 : vector<8x1xf32>
    %cst_23 = arith.constant 1.000000e+00 : f32
    %51 = vector.broadcast %cst_23 : f32 to vector<8x1xf32>
    %52 = arith.addf %51, %50 : vector<8x1xf32>
    %53 = arith.divf %51, %52 : vector<8x1xf32>
    %54 = vector.broadcast %53 : vector<8x1xf32> to vector<8x256xf32>
    %55 = arith.mulf %0, %54 : vector<8x256xf32>
    %c0_24 = arith.constant 0 : index
    %c0_25 = arith.constant 0 : index
    %56 = vector.load %arg6[%c0_24, %c0_25] : memref<8x256xf32, #tpu.memory_space<vmem>>, vector<8x256xf32>
    tpu.vector_store %arg6[%c0_24, %c0_25], %55 {strides = array<i32>} : memref<8x256xf32, #tpu.memory_space<vmem>>, vector<8x256xf32>,
    return
  }
  func.func @transform_0(%arg0: i32) -> (i32, i32) {
    %c0_i32 = arith.constant 0 : i32
    %c0_i32_0 = arith.constant 0 : i32
    return %arg0, %c0_i32 : i32, i32
  }
  func.func @transform_1(%arg0: i32) -> (i32, i32) {
    %c0_i32 = arith.constant 0 : i32
    %c0_i32_0 = arith.constant 0 : i32
    %c0_i32_1 = arith.constant 0 : i32
    return %c0_i32, %c0_i32_0 : i32, i32
  }
  func.func @transform_2(%arg0: i32) -> (i32, i32) {
    %c0_i32 = arith.constant 0 : i32
    %c0_i32_0 = arith.constant 0 : i32
    %c0_i32_1 = arith.constant 0 : i32
    return %c0_i32, %c0_i32_0 : i32, i32
  }
  func.func @transform_3(%arg0: i32) -> (i32, i32) {
    %c0_i32 = arith.constant 0 : i32
    %c0_i32_0 = arith.constant 0 : i32
    %c0_i32_1 = arith.constant 0 : i32
    return %c0_i32, %c0_i32_0 : i32, i32
  }
  func.func @transform_4(%arg0: i32) -> (i32, i32) {
    %c0_i32 = arith.constant 0 : i32
    %c0_i32_0 = arith.constant 0 : i32
    %c0_i32_1 = arith.constant 0 : i32
    return %c0_i32, %c0_i32_0 : i32, i32
  }
  func.func @transform_5(%arg0: i32) -> (i32, i32) {
    %c0_i32 = arith.constant 0 : i32
    %c0_i32_0 = arith.constant 0 : i32
    return %arg0, %c0_i32 : i32, i32
  }
}

</mosaic_0001>

<llo_original>
// kernel: tpu_custom_call.1
$region0: #{tpu_custom_call.1}
  #allocation0 [shape = 'u32[]', space=smem, size = 0x4, offset = 0x4, fixed_abs, tag = 'smem constant byte address 0x4 - core index']
  #allocation1 [shape = 'u32[144,128]{1,0:T(1,128)}', space=vmem, size = 0x12000, scoped, tag = 'internal scratch']
  %s0 = inlined_call_operand.vmem [shape: f32[8,256], index: 0, kind: input, shape index: {}]
  %s1 = inlined_call_operand.vmem [shape: f32[8,2], index: 1, kind: input, shape index: {}]
  %s2 = inlined_call_operand.vmem [shape: f32[1,2], index: 2, kind: input, shape index: {}]
  %s3 = inlined_call_operand.vmem [shape: f32[8,2], index: 3, kind: input, shape index: {}]
  %s4 = inlined_call_operand.vmem [shape: f32[8,1], index: 4, kind: input, shape index: {}]
  %s5 = inlined_call_operand.hbm [shape: f32[8,256], index: 5, kind: output, shape index: {}]
  %s6 = sld [smem:[#allocation0]]
  $region30: #{tpu_custom_call.1} parent=0
    _
  %s8 = ssub.s32 1, %s6
  %s9 = scalar_select 0, %s8, %s6
  $region1: #{tpu_custom_call.1} parent=0
    #allocation2 [shape = 'u8[8192]{0}', space=vmem, size = 0x2000, scoped, tag = 'output window, operand 0, single buffered']
    #allocation3 [shape = 's32[1]{0}', space=sflag, size = 0x4, scoped, tag = 'scoped memory for tpu_custom_call.1']
    %10 = vsyncpa [#allocation3], 0
    // Predicated region
    $region2: #{tpu_custom_call.1} parent=1 // pred_check
      _
    $region3: #{tpu_custom_call.1} parent=1 // pred_check_branch
      %12 = sbr.rel (0) target = $region5
    $region4: #{tpu_custom_call.1} parent=1 // pred_region
      _
    $region5: #{tpu_custom_call.1} parent=1 // pred_fallthru
      _
    // Predicated region
    $region6: #{tpu_custom_call.1} parent=1 // pred_check
      _
    $region7: #{tpu_custom_call.1} parent=1 // pred_check_branch
      %14 = sbr.rel (0) target = $region9
    $region8: #{tpu_custom_call.1} parent=1 // pred_region
      _
    $region9: #{tpu_custom_call.1} parent=1 // pred_fallthru
      _
    // Predicated region
    $region10: #{tpu_custom_call.1} parent=1 // pred_check
      _
    $region11: #{tpu_custom_call.1} parent=1 // pred_check_branch
      %16 = sbr.rel (0) target = $region13
    $region12: #{tpu_custom_call.1} parent=1 // pred_region
      _
    $region13: #{tpu_custom_call.1} parent=1 // pred_fallthru
      _
    // Predicated region
    $region14: #{tpu_custom_call.1} parent=1 // pred_check
      _
    $region15: #{tpu_custom_call.1} parent=1 // pred_check_branch
      %18 = sbr.rel (0) target = $region17
    $region16: #{tpu_custom_call.1} parent=1 // pred_region
      _
    $region17: #{tpu_custom_call.1} parent=1 // pred_fallthru
      _
    // Predicated region
    $region18: #{tpu_custom_call.1} parent=1 // pred_check
      _
    $region19: #{tpu_custom_call.1} parent=1 // pred_check_branch
      %20 = sbr.rel (0) target = $region21
    $region20: #{tpu_custom_call.1} parent=1 // pred_region
      _
    $region21: #{tpu_custom_call.1} parent=1 // pred_fallthru
      _
    %v21 = vld [vmem:[%s0] sm:$0xff]
    %v22 = vld [vmem:[%s0 + $0x8] sm:$0xff]
    %23 = vmatprep.subr.mxu0 0.0
    %24 = vmatpush1.msra.mxu0 1.0
    %25 = vmatprep.subr.mxu0 0.0
    %26 = vmatpush1.msra.mxu0 1.0
    %27 = vmatprep.subr.mxu0 0.0
    %28 = vmatpush1.msra.mxu0 1.0
    %29 = vmatprep.subr.mxu0 0.0
    %30 = vmatpush1.msra.mxu0 1.0
    %31 = vmatprep.subr.mxu0 0.0
    %32 = vmatpush1.msra.mxu0 1.0
    %33 = vmatprep.subr.mxu0 0.0
    %34 = vmatpush1.msra.mxu0 1.0
    %35 = vmatprep.subr.mxu0 0.0
    %36 = vmatpush1.msra.mxu0 1.0
    %37 = vmatprep.subr.mxu0 0.0
    %38 = vmatpush1.msra.mxu0 1.0
    %39 = vmatprep.subr.mxu0 0.0
    %40 = vmatpush1.msra.mxu0 1.0
    %41 = vmatprep.subr.mxu0 0.0
    %42 = vmatpush1.msra.mxu0 1.0
    %43 = vmatprep.subr.mxu0 0.0
    %44 = vmatpush1.msra.mxu0 1.0
    %45 = vmatprep.subr.mxu0 0.0
    %46 = vmatpush1.msra.mxu0 1.0
    %47 = vmatprep.subr.mxu0 0.0
    %48 = vmatpush1.msra.mxu0 1.0
    %49 = vmatprep.subr.mxu0 0.0
    %50 = vmatpush1.msra.mxu0 1.0
    %51 = vmatprep.subr.mxu0 0.0
    %52 = vmatpush1.msra.mxu0 1.0
    %53 = vmatprep.subr.mxu0 0.0
    %54 = vmatpush1.msra.mxu0 1.0
    %55 = vmatprep.subr.mxu0 0.0
    %56 = vmatpush1.msra.mxu0 1.0
    %57 = vmatprep.subr.mxu0 0.0
    %58 = vmatpush1.msra.mxu0 1.0
    %59 = vmatprep.subr.mxu0 0.0
    %60 = vmatpush1.msra.mxu0 1.0
    %61 = vmatprep.subr.mxu0 0.0
    %62 = vmatpush1.msra.mxu0 1.0
    %63 = vmatprep.subr.mxu0 0.0
    %64 = vmatpush1.msra.mxu0 1.0
    %65 = vmatprep.subr.mxu0 0.0
    %66 = vmatpush1.msra.mxu0 1.0
    %67 = vmatprep.subr.mxu0 0.0
    %68 = vmatpush1.msra.mxu0 1.0
    %69 = vmatprep.subr.mxu0 0.0
    %70 = vmatpush1.msra.mxu0 1.0
    %71 = vmatprep.subr.mxu0 0.0
    %72 = vmatpush1.msra.mxu0 1.0
    %73 = vmatprep.subr.mxu0 0.0
    %74 = vmatpush1.msra.mxu0 1.0
    %75 = vmatprep.subr.mxu0 0.0
    %76 = vmatpush1.msra.mxu0 1.0
    %77 = vmatprep.subr.mxu0 0.0
    %78 = vmatpush1.msra.mxu0 1.0
    %79 = vmatprep.subr.mxu0 0.0
    %80 = vmatpush1.msra.mxu0 1.0
    %81 = vmatprep.subr.mxu0 0.0
    %82 = vmatpush1.msra.mxu0 1.0
    %83 = vmatprep.subr.mxu0 0.0
    %84 = vmatpush1.msra.mxu0 1.0
    %85 = vmatprep.subr.mxu0 0.0
    %86 = vmatpush1.msra.mxu0 1.0
    %87 = vmatprep.mubr.f32.mxu0 %v22
    %88 = vmatmul.mubr.f32.gmra.mrb[0].mxu0 %v21
    %v89 = vpop.f32.mrb[0].mxu0
    %v90 = vadd.f32 0.0, %v89
    %v91 = vpop.f32.mrb[0].mxu0
    %92 = vdwg.mxu0
    %v93 = vmul.f32 %v90, 0.00390625
    %v94 = vlaneseq
    %v95 = vand.u32 %v94, 127
    %v96 = vlaneseq
    %v97 = vshrl.u32 %v96, 7
    %v98 = vmul.u32 %v97, 4
    %vm99 = vcmp.ge.s32.totalorder %v95, %v98
    %v100 = vadd.s32 %v97, 1
    %v101 = vmul.u32 %v100, 4
    %vm102 = vcmp.lt.s32.totalorder %v95, %v101
    %vm103 = vmand %vm99, %vm102
    %v104 = vsel %vm103, 1.0, 0.0
    %v105 = vmul.u32 %v95, 4
    %vm106 = vcmp.ge.s32.totalorder %v97, %v105
    %v107 = vadd.s32 %v95, 1
    %v108 = vmul.u32 %v107, 4
    %vm109 = vcmp.lt.s32.totalorder %v97, %v108
    %vm110 = vmand %vm106, %vm109
    %v111 = vsel %vm110, 1.0, 0.0
    %v112 = vld [vmem:[%s1] sm:$0xff]
    %114 = vset.pattern.permute.xlu0 0
    %115 = vperm.xlu0 %114, %v93
    %v116 = vpop.permute.xlu0 %115
    %v118 = vmul.f32 %v116, %v112
    %v119 = vld [vmem:[%s2] sm:$0x1]
    %v121 = vlaneseq
    %v122 = vshrl.u32 %v121, 7
    %v123 = vsub.s32 0, %v122
    %v124 = vrot.slane %v119, %v123
    %vm126 = vcmask 64512
    %v128 = vsel %vm126, %v104, 0
    %130 = vmatprep.subr.mxu0 0.0
    %131 = vmatpush1.msra.mxu0 %v118
    %132 = vmatprep.subr.mxu0 0.0
    %133 = vmatpush1.msra.mxu0 0.0
    %134 = vmatprep.subr.mxu0 0.0
    %135 = vmatpush1.msra.mxu0 0.0
    %136 = vmatprep.subr.mxu0 0.0
    %137 = vmatpush1.msra.mxu0 0.0
    %138 = vmatprep.subr.mxu0 0.0
    %139 = vmatpush1.msra.mxu0 0.0
    %140 = vmatprep.subr.mxu0 0.0
    %141 = vmatpush1.msra.mxu0 0.0
    %142 = vmatprep.subr.mxu0 0.0
    %143 = vmatpush1.msra.mxu0 0.0
    %144 = vmatprep.subr.mxu0 0.0
    %145 = vmatpush1.msra.mxu0 0.0
    %146 = vmatprep.subr.mxu0 0.0
    %147 = vmatpush1.msra.mxu0 0.0
    %148 = vmatprep.subr.mxu0 0.0
    %149 = vmatpush1.msra.mxu0 0.0
    %150 = vmatprep.subr.mxu0 0.0
    %151 = vmatpush1.msra.mxu0 0.0
    %152 = vmatprep.subr.mxu0 0.0
    %153 = vmatpush1.msra.mxu0 0.0
    %154 = vmatprep.subr.mxu0 0.0
    %155 = vmatpush1.msra.mxu0 0.0
    %156 = vmatprep.subr.mxu0 0.0
    %157 = vmatpush1.msra.mxu0 0.0
    %158 = vmatprep.subr.mxu0 0.0
    %159 = vmatpush1.msra.mxu0 0.0
    %160 = vmatprep.subr.mxu0 0.0
    %161 = vmatpush1.msra.mxu0 0.0
    %162 = vmatprep.subr.mxu0 0.0
    %163 = vmatpush1.msra.mxu0 0.0
    %164 = vmatprep.subr.mxu0 0.0
    %165 = vmatpush1.msra.mxu0 0.0
    %166 = vmatprep.subr.mxu0 0.0
    %167 = vmatpush1.msra.mxu0 0.0
    %168 = vmatprep.subr.mxu0 0.0
    %169 = vmatpush1.msra.mxu0 0.0
    %170 = vmatprep.subr.mxu0 0.0
    %171 = vmatpush1.msra.mxu0 0.0
    %172 = vmatprep.subr.mxu0 0.0
    %173 = vmatpush1.msra.mxu0 0.0
    %174 = vmatprep.subr.mxu0 0.0
    %175 = vmatpush1.msra.mxu0 0.0
    %176 = vmatprep.subr.mxu0 0.0
    %177 = vmatpush1.msra.mxu0 0.0
    %178 = vmatprep.subr.mxu0 0.0
    %179 = vmatpush1.msra.mxu0 0.0
    %180 = vmatprep.subr.mxu0 0.0
    %181 = vmatpush1.msra.mxu0 0.0
    %182 = vmatprep.subr.mxu0 0.0
    %183 = vmatpush1.msra.mxu0 0.0
    %184 = vmatprep.subr.mxu0 0.0
    %185 = vmatpush1.msra.mxu0 0.0
    %186 = vmatprep.subr.mxu0 0.0
    %187 = vmatpush1.msra.mxu0 0.0
    %188 = vmatprep.subr.mxu0 0.0
    %189 = vmatpush1.msra.mxu0 0.0
    %190 = vmatprep.subr.mxu0 0.0
    %191 = vmatpush1.msra.mxu0 0.0
    %192 = vmatprep.subr.mxu0 0.0
    %193 = vmatpush1.msra.mxu0 0.0
    %194 = vmatprep.mubr.f32.mxu0 0.0
    %195 = vmatmul.mubr.f32.gmra.mrb[0].mxu0 %v128
    %v196 = vpop.f32.mrb[0].mxu0
    %v197 = vadd.f32 %v124, %v196
    %v198 = vpop.f32.mrb[0].mxu0
    %199 = vdwg.mxu0
    %v200 = vmax.f32 %v197, 0.0
    %vm201 = vcmask 15360
    %v203 = vsel %vm201, %v111, 0
    %vm205 = vcmask 1041408
    %v207 = vsel %vm205, %v200, 0
    %209 = vmatprep.subr.mxu0 0.0
    %210 = vmatpush1.msra.mxu0 %v207
    %211 = vmatprep.subr.mxu0 0.0
    %212 = vmatpush1.msra.mxu0 0.0
    %213 = vmatprep.subr.mxu0 0.0
    %214 = vmatpush1.msra.mxu0 0.0
    %215 = vmatprep.subr.mxu0 0.0
    %216 = vmatpush1.msra.mxu0 0.0
    %217 = vmatprep.subr.mxu0 0.0
    %218 = vmatpush1.msra.mxu0 0.0
    %219 = vmatprep.subr.mxu0 0.0
    %220 = vmatpush1.msra.mxu0 0.0
    %221 = vmatprep.subr.mxu0 0.0
    %222 = vmatpush1.msra.mxu0 0.0
    %223 = vmatprep.subr.mxu0 0.0
    %224 = vmatpush1.msra.mxu0 0.0
    %225 = vmatprep.subr.mxu0 0.0
    %226 = vmatpush1.msra.mxu0 0.0
    %227 = vmatprep.subr.mxu0 0.0
    %228 = vmatpush1.msra.mxu0 0.0
    %229 = vmatprep.subr.mxu0 0.0
    %230 = vmatpush1.msra.mxu0 0.0
    %231 = vmatprep.subr.mxu0 0.0
    %232 = vmatpush1.msra.mxu0 0.0
    %233 = vmatprep.subr.mxu0 0.0
    %234 = vmatpush1.msra.mxu0 0.0
    %235 = vmatprep.subr.mxu0 0.0
    %236 = vmatpush1.msra.mxu0 0.0
    %237 = vmatprep.subr.mxu0 0.0
    %238 = vmatpush1.msra.mxu0 0.0
    %239 = vmatprep.subr.mxu0 0.0
    %240 = vmatpush1.msra.mxu0 0.0
    %241 = vmatprep.subr.mxu0 0.0
    %242 = vmatpush1.msra.mxu0 0.0
    %243 = vmatprep.subr.mxu0 0.0
    %244 = vmatpush1.msra.mxu0 0.0
    %245 = vmatprep.subr.mxu0 0.0
    %246 = vmatpush1.msra.mxu0 0.0
    %247 = vmatprep.subr.mxu0 0.0
    %248 = vmatpush1.msra.mxu0 0.0
    %249 = vmatprep.subr.mxu0 0.0
    %250 = vmatpush1.msra.mxu0 0.0
    %251 = vmatprep.subr.mxu0 0.0
    %252 = vmatpush1.msra.mxu0 0.0
    %253 = vmatprep.subr.mxu0 0.0
    %254 = vmatpush1.msra.mxu0 0.0
    %255 = vmatprep.subr.mxu0 0.0
    %256 = vmatpush1.msra.mxu0 0.0
    %257 = vmatprep.subr.mxu0 0.0
    %258 = vmatpush1.msra.mxu0 0.0
    %259 = vmatprep.subr.mxu0 0.0
    %260 = vmatpush1.msra.mxu0 0.0
    %261 = vmatprep.subr.mxu0 0.0
    %262 = vmatpush1.msra.mxu0 0.0
    %263 = vmatprep.subr.mxu0 0.0
    %264 = vmatpush1.msra.mxu0 0.0
    %265 = vmatprep.subr.mxu0 0.0
    %266 = vmatpush1.msra.mxu0 0.0
    %267 = vmatprep.subr.mxu0 0.0
    %268 = vmatpush1.msra.mxu0 0.0
    %269 = vmatprep.subr.mxu0 0.0
    %270 = vmatpush1.msra.mxu0 0.0
    %271 = vmatprep.subr.mxu0 0.0
    %272 = vmatpush1.msra.mxu0 0.0
    %273 = vmatprep.mubr.f32.mxu0 0.0
    %274 = vmatmul.mubr.f32.gmra.mrb[0].mxu0 %v203
    %v275 = vpop.f32.mrb[0].mxu0
    %v276 = vadd.f32 0.0, %v275
    %v277 = vpop.f32.mrb[0].mxu0
    %278 = vdwg.mxu0
    %v279 = vld [vmem:[%s3] sm:$0xff]
    %v280 = vmul.f32 %v276, %v279
    %v281 = vsel %vm201, %v280, 0.0
    %282 = vadd.xlane.f32.xlu0 %v281
    %v283 = vpop.xlane.xlu0 %282
    %v284 = vld [vmem:[%s4] sm:$0xff]
    %v285 = vadd.f32 %v283, %v284
    %v286 = vxor.u32 %v285, 2147483648
    %v287 = vmul.f32 %v286, 1.442695
    %v288 = vpow.pop %v287
    %v289 = vadd.f32 %v288, 1.0
    %v290 = vrcp.pop %v289
    %v291 = vmul.f32 1.0, %v290
    %293 = vset.pattern.permute.xlu0 0
    %294 = vperm.xlu0 %293, %v291
    %v295 = vpop.permute.xlu0 %294
    %v297 = vmul.f32 %v21, %v295
    %v298 = vmul.f32 %v22, %v295
    %299 = vst [vmem:[#allocation2] sm:$0xff] %v297
    %300 = vst [vmem:[#allocation2 + $0x8] sm:$0xff] %v298
    // Predicated region
    $region22: #{tpu_custom_call.1} parent=1 // pred_check
      _
    $region23: #{tpu_custom_call.1} parent=1 // pred_check_branch
      %302 = sbr.rel (0) target = $region25
    $region24: #{tpu_custom_call.1} parent=1 // pred_region
      %s304 = ssub.s32 256, 256
      %305 = vsyncadd [#allocation3], %s304
      %s307 = sshll.u32 [#allocation2], 4
      %s308 = int_to_ptr.vmem [resolvable:$true] %s307
      %310 = dma.vmem_to_hbm [thread:$0]  %s308, 256, %s5, [#allocation3]
    $region25: #{tpu_custom_call.1} parent=1 // pred_fallthru
      _
    // Predicated region
    $region26: #{tpu_custom_call.1} parent=1 // pred_check
      _
    $region27: #{tpu_custom_call.1} parent=1 // pred_check_branch
      %312 = sbr.rel (0) target = $region29
    $region28: #{tpu_custom_call.1} parent=1 // pred_region
      %313 = dma.done [#allocation3], 256
    $region29: #{tpu_custom_call.1} parent=1 // pred_fallthru
      _
    %314 = vsyncpa [#allocation3], 1

</llo_original>
